<compile_context>
chip_gen: v7x
topology: tpu7x:2x2x1
jax: 0.10.0
libtpu: 0.0.40
codegen_flags: <defaults>
</compile_context>

<pallas_src>
import jax
import jax.numpy as jnp
from jax import lax
from jax.experimental import pallas as pl
from jax.experimental.pallas import tpu as pltpu


def _recognition_kernel(x_ref, w1_ref, b1_ref, w2_ref, b2_ref, o_ref):
    # x_ref:  (TB, obs_dim)      input batch tile, PyTorch layout
    # w1_ref: (nhidden, obs_dim) PyTorch Linear layout (out_features, in_features)
    # b1_ref: (1, nhidden)
    # w2_ref: (n_dim, nhidden)
    # b2_ref: (1, n_dim)
    # o_ref:  (TB, n_dim)        output tile in the module's native layout
    x = x_ref[...]

    # h = tanh(x @ W1^T + b1): contract obs_dim of both operands; the layout
    # shuffle lands on the tiny (32,3) weight, not the big batch tile.
    h = lax.dot_general(
        x, w1_ref[...],
        dimension_numbers=(((1,), (1,)), ((), ())),
        preferred_element_type=jnp.float32,
    ) + b1_ref[...]                              # (TB, nhidden)
    h = jnp.tanh(h)                              # f32 tanh on the EUP

    # out = h @ W2^T + b2 : contract nhidden; again only the tiny (3,32) weight
    # needs a shuffle.
    out = lax.dot_general(
        h, w2_ref[...],
        dimension_numbers=(((1,), (1,)), ((), ())),
        preferred_element_type=jnp.float32,
    ) + b2_ref[...]                              # (TB, n_dim)
    o_ref[...] = out.astype(o_ref.dtype)


def _round_up(a, m):
    return ((a + m - 1) // m) * m


def recognition_q_logvar(x, w1, b1, w2, b2, *, tb=2048):
    """Forward pass of Recognition_q_logvar.

    x: (B, obs_dim); w1: (nhidden, obs_dim); b1: (nhidden,);
    w2: (n_dim, nhidden); b2: (n_dim,).  Returns (B, n_dim).
    """
    B, obs_dim = x.shape
    nhidden = w1.shape[0]
    n_dim = w2.shape[0]

    # Metadata-only reshapes; weights stay in PyTorch layout (no XLA transposes).
    b1_r = b1.reshape(1, nhidden)
    b2_r = b2.reshape(1, n_dim)

    if B <= 256:
        # Small batch: single block whose dims equal the full array dims
        # (no (8,128) constraint, no padding, one pallas_call, zero wrapper ops).
        TB = B
    else:
        # Large batch: 128-multiple tile, sized so the grid has >= 2 steps
        # (v7x megacore sharding via dimension_semantics), capped at `tb` so the
        # lane-padded pipeline buffers fit comfortably in v5e's 16 MiB scoped VMEM.
        TB = min(tb, _round_up(pl.cdiv(B, 2), 128))
    grid = (pl.cdiv(B, TB),)

    flops = 2 * B * (obs_dim * nhidden + nhidden * n_dim)
    bytes_accessed = 4 * (B * obs_dim + nhidden * obs_dim + nhidden
                          + n_dim * nhidden + n_dim + n_dim * B)

    out = pl.pallas_call(
        _recognition_kernel,
        out_shape=jax.ShapeDtypeStruct((B, n_dim), x.dtype),
        grid=grid,
        in_specs=[
            pl.BlockSpec((TB, obs_dim), lambda i: (i, 0)),       # x tile advances with i
            pl.BlockSpec((nhidden, obs_dim), lambda i: (0, 0)),  # weights/biases resident
            pl.BlockSpec((1, nhidden), lambda i: (0, 0)),
            pl.BlockSpec((n_dim, nhidden), lambda i: (0, 0)),
            pl.BlockSpec((1, n_dim), lambda i: (0, 0)),
        ],
        out_specs=pl.BlockSpec((TB, n_dim), lambda i: (i, 0)),   # direct (B, n_dim) store
        compiler_params=pltpu.CompilerParams(
            # Independent batch tiles -> shard across TensorCores on v7x megacore.
            dimension_semantics=("parallel",),
        ),
        cost_estimate=pl.CostEstimate(
            flops=flops,
            transcendentals=B * nhidden,
            bytes_accessed=bytes_accessed,
        ),
    )(x, w1, b1_r, w2, b2_r)
    return out


def _init_params(key, latent_dim=6, obs_dim=3, nhidden=32):
    """Deterministic init mirroring nn.Linear default (uniform +/- 1/sqrt(fan_in))."""
    n_dim = latent_dim // 2
    k1, k2, k3, k4 = jax.random.split(key, 4)
    bound1 = 1.0 / jnp.sqrt(obs_dim)
    bound2 = 1.0 / jnp.sqrt(nhidden)
    w1 = jax.random.uniform(k1, (nhidden, obs_dim), jnp.float32, -bound1, bound1)
    b1 = jax.random.uniform(k2, (nhidden,), jnp.float32, -bound1, bound1)
    w2 = jax.random.uniform(k3, (n_dim, nhidden), jnp.float32, -bound2, bound2)
    b2 = jax.random.uniform(k4, (n_dim,), jnp.float32, -bound2, bound2)
    return w1, b1, w2, b2


if __name__ == "__main__":
    key = jax.random.PRNGKey(0)
    k_params, k_x1, k_x2 = jax.random.split(key, 3)

    latent_dim, obs_dim, nhidden = 6, 3, 32
    n_dim = latent_dim // 2
    w1, b1, w2, b2 = _init_params(k_params, latent_dim, obs_dim, nhidden)

    def ref_fn(xx):
        # Same math as the PyTorch module.
        return jnp.tanh(xx @ w1.T + b1) @ w2.T + b2

    # Small batch (module's nominal shapes): single full-array block path.
    B_small = 8
    x_small = jax.random.normal(k_x1, (B_small, obs_dim), jnp.float32)
    out_small = jax.block_until_ready(recognition_q_logvar(x_small, w1, b1, w2, b2))
    assert out_small.shape == (B_small, n_dim)
    assert jnp.allclose(out_small, ref_fn(x_small), atol=1e-5, rtol=1e-5)

    # Larger batch: exercises the multi-step grid with a ragged (masked) final block.
    B_big = 1300
    x_big = jax.random.normal(k_x2, (B_big, obs_dim), jnp.float32)
    out_big = jax.block_until_ready(recognition_q_logvar(x_big, w1, b1, w2, b2))
    assert out_big.shape == (B_big, n_dim)
    assert jnp.allclose(out_big, ref_fn(x_big), atol=1e-5, rtol=1e-5)

    print("KERNEL_OK")
</pallas_src>

<mosaic_0001>
module attributes {stable_mosaic.version = 11 : i64} {
  func.func @_recognition_kernel(%arg0: i32, %arg1: memref<8x3xf32, #tpu.memory_space<vmem>>, %arg2: memref<32x3xf32, #tpu.memory_space<vmem>>, %arg3: memref<1x32xf32, #tpu.memory_space<vmem>>, %arg4: memref<3x32xf32, #tpu.memory_space<vmem>>, %arg5: memref<1x3xf32, #tpu.memory_space<vmem>>, %arg6: memref<8x3xf32, #tpu.memory_space<vmem>>) attributes {dimension_semantics = [#tpu.dimension_semantics<parallel>], iteration_bounds = array<i64: 1>, scalar_prefetch = 0 : i64, scratch_operands = 0 : i64, tpu.core_type = #tpu.core_type<tc>, window_params = [{transform_indices = @transform_0, window_bounds = array<i64: 8, 3>}, {pipeline_mode = #tpu.pipeline_mode<synchronous>, transform_indices = @transform_1, window_bounds = array<i64: 32, 3>}, {pipeline_mode = #tpu.pipeline_mode<synchronous>, transform_indices = @transform_2, window_bounds = array<i64: 1, 32>}, {pipeline_mode = #tpu.pipeline_mode<synchronous>, transform_indices = @transform_3, window_bounds = array<i64: 3, 32>}, {pipeline_mode = #tpu.pipeline_mode<synchronous>, transform_indices = @transform_4, window_bounds = array<i64: 1, 3>}, {transform_indices = @transform_5, window_bounds = array<i64: 8, 3>}]} {
    %c0 = arith.constant 0 : index
    %c0_0 = arith.constant 0 : index
    %0 = vector.load %arg1[%c0, %c0_0] : memref<8x3xf32, #tpu.memory_space<vmem>>, vector<8x3xf32>
    %c0_1 = arith.constant 0 : index
    %c0_2 = arith.constant 0 : index
    %1 = vector.load %arg2[%c0_1, %c0_2] : memref<32x3xf32, #tpu.memory_space<vmem>>, vector<32x3xf32>
    %cst = arith.constant dense<0.000000e+00> : vector<8x32xf32>
    %2 = tpu.matmul %0, %1, %cst {dimension_numbers = #tpu.dot_dimension_numbers<[1], [1], [0], [0], [0, 0, 1, 0], [], []>} : vector<8x3xf32>, vector<32x3xf32>, vector<8x32xf32> -> vector<8x32xf32>
    %c0_3 = arith.constant 0 : index
    %c0_4 = arith.constant 0 : index
    %3 = vector.load %arg3[%c0_3, %c0_4] : memref<1x32xf32, #tpu.memory_space<vmem>>, vector<1x32xf32>
    %4 = vector.broadcast %3 : vector<1x32xf32> to vector<8x32xf32>
    %5 = arith.addf %2, %4 : vector<8x32xf32>
    %6 = math.tanh %5 : vector<8x32xf32>
    %c0_5 = arith.constant 0 : index
    %c0_6 = arith.constant 0 : index
    %7 = vector.load %arg4[%c0_5, %c0_6] : memref<3x32xf32, #tpu.memory_space<vmem>>, vector<3x32xf32>
    %cst_7 = arith.constant dense<0.000000e+00> : vector<8x3xf32>
    %8 = tpu.matmul %6, %7, %cst_7 {dimension_numbers = #tpu.dot_dimension_numbers<[1], [1], [0], [0], [0, 0, 1, 0], [], []>} : vector<8x32xf32>, vector<3x32xf32>, vector<8x3xf32> -> vector<8x3xf32>
    %c0_8 = arith.constant 0 : index
    %c0_9 = arith.constant 0 : index
    %9 = vector.load %arg5[%c0_8, %c0_9] : memref<1x3xf32, #tpu.memory_space<vmem>>, vector<1x3xf32>
    %10 = vector.broadcast %9 : vector<1x3xf32> to vector<8x3xf32>
    %11 = arith.addf %8, %10 : vector<8x3xf32>
    %c0_10 = arith.constant 0 : index
    %c0_11 = arith.constant 0 : index
    %12 = vector.load %arg6[%c0_10, %c0_11] : memref<8x3xf32, #tpu.memory_space<vmem>>, vector<8x3xf32>
    tpu.vector_store %arg6[%c0_10, %c0_11], %11 {strides = array<i32>} : memref<8x3xf32, #tpu.memory_space<vmem>>, vector<8x3xf32>,
    return
  }
  func.func @transform_0(%arg0: i32) -> (i32, i32) {
    %c0_i32 = arith.constant 0 : i32
    %c0_i32_0 = arith.constant 0 : i32
    return %arg0, %c0_i32 : i32, i32
  }
  func.func @transform_1(%arg0: i32) -> (i32, i32) {
    %c0_i32 = arith.constant 0 : i32
    %c0_i32_0 = arith.constant 0 : i32
    %c0_i32_1 = arith.constant 0 : i32
    return %c0_i32, %c0_i32_0 : i32, i32
  }
  func.func @transform_2(%arg0: i32) -> (i32, i32) {
    %c0_i32 = arith.constant 0 : i32
    %c0_i32_0 = arith.constant 0 : i32
    %c0_i32_1 = arith.constant 0 : i32
    return %c0_i32, %c0_i32_0 : i32, i32
  }
  func.func @transform_3(%arg0: i32) -> (i32, i32) {
    %c0_i32 = arith.constant 0 : i32
    %c0_i32_0 = arith.constant 0 : i32
    %c0_i32_1 = arith.constant 0 : i32
    return %c0_i32, %c0_i32_0 : i32, i32
  }
  func.func @transform_4(%arg0: i32) -> (i32, i32) {
    %c0_i32 = arith.constant 0 : i32
    %c0_i32_0 = arith.constant 0 : i32
    %c0_i32_1 = arith.constant 0 : i32
    return %c0_i32, %c0_i32_0 : i32, i32
  }
  func.func @transform_5(%arg0: i32) -> (i32, i32) {
    %c0_i32 = arith.constant 0 : i32
    %c0_i32_0 = arith.constant 0 : i32
    return %arg0, %c0_i32 : i32, i32
  }
}

</mosaic_0001>

<llo_original>
// kernel: tpu_custom_call.1
$region0: #{tpu_custom_call.1}
  #allocation0 [shape = 'u32[]', space=smem, size = 0x4, offset = 0x4, fixed_abs, tag = 'smem constant byte address 0x4 - core index']
  #allocation1 [shape = 'u32[144,128]{1,0:T(1,128)}', space=vmem, size = 0x12000, scoped, tag = 'internal scratch']
  %s0 = inlined_call_operand.vmem [shape: f32[8,3], index: 0, kind: input, shape index: {}]
  %s1 = inlined_call_operand.vmem [shape: f32[32,3], index: 1, kind: input, shape index: {}]
  %s2 = inlined_call_operand.vmem [shape: f32[1,32], index: 2, kind: input, shape index: {}]
  %s3 = inlined_call_operand.vmem [shape: f32[3,32], index: 3, kind: input, shape index: {}]
  %s4 = inlined_call_operand.vmem [shape: f32[1,3], index: 4, kind: input, shape index: {}]
  %s5 = inlined_call_operand.vmem [shape: f32[8,3], index: 5, kind: output, shape index: {}]
  %s6 = sld [smem:[#allocation0]]
  $region30: #{tpu_custom_call.1} parent=0
    _
  %s8 = ssub.s32 1, %s6
  %s9 = scalar_select 0, %s8, %s6
  // Predicated region
  $region2: #{tpu_custom_call.1} parent=0 // pred_check
    _
  $region3: #{tpu_custom_call.1} parent=0 // pred_check_branch
    %11 = sbr.rel (0) target = $region5
  $region4: #{tpu_custom_call.1} parent=0 // pred_region
    _
  $region5: #{tpu_custom_call.1} parent=0 // pred_fallthru
    _
  // Predicated region
  $region6: #{tpu_custom_call.1} parent=0 // pred_check
    _
  $region7: #{tpu_custom_call.1} parent=0 // pred_check_branch
    %13 = sbr.rel (0) target = $region9
  $region8: #{tpu_custom_call.1} parent=0 // pred_region
    _
  $region9: #{tpu_custom_call.1} parent=0 // pred_fallthru
    _
  // Predicated region
  $region10: #{tpu_custom_call.1} parent=0 // pred_check
    _
  $region11: #{tpu_custom_call.1} parent=0 // pred_check_branch
    %15 = sbr.rel (0) target = $region13
  $region12: #{tpu_custom_call.1} parent=0 // pred_region
    _
  $region13: #{tpu_custom_call.1} parent=0 // pred_fallthru
    _
  // Predicated region
  $region14: #{tpu_custom_call.1} parent=0 // pred_check
    _
  $region15: #{tpu_custom_call.1} parent=0 // pred_check_branch
    %17 = sbr.rel (0) target = $region17
  $region16: #{tpu_custom_call.1} parent=0 // pred_region
    _
  $region17: #{tpu_custom_call.1} parent=0 // pred_fallthru
    _
  // Predicated region
  $region18: #{tpu_custom_call.1} parent=0 // pred_check
    _
  $region19: #{tpu_custom_call.1} parent=0 // pred_check_branch
    %19 = sbr.rel (0) target = $region21
  $region20: #{tpu_custom_call.1} parent=0 // pred_region
    _
  $region21: #{tpu_custom_call.1} parent=0 // pred_fallthru
    _
  %v20 = vld [vmem:[%s0] sm:$0xff]
  %v21 = vld [vmem:[%s1] sm:$0xff]
  %v22 = vld [vmem:[%s1 + $0x8] sm:$0xff]
  %v23 = vld [vmem:[%s1 + $0x10] sm:$0xff]
  %v24 = vld [vmem:[%s1 + $0x18] sm:$0xff]
  %v25 = vld [vmem:[%s2] sm:$0x1]
  %v27 = vlaneseq
  %v28 = vshrl.u32 %v27, 7
  %v29 = vsub.s32 0, %v28
  %v30 = vrot.slane %v25, %v29
  %vm32 = vcmask 23552
  %v34 = vsel %vm32, %v20, 0
  %v37 = vsel %vm32, %v21, 0
  %v40 = vsel %vm32, %v22, 0
  %v43 = vsel %vm32, %v23, 0
  %v46 = vsel %vm32, %v24, 0
  %48 = vmatprep.subr.mxu0 0.0
  %49 = vmatpush1.xpose.msra.mxu0 %v37
  %50 = vmatprep.subr.mxu0 0.0
  %51 = vmatpush1.xpose.msra.mxu0 %v40
  %52 = vmatprep.subr.mxu0 0.0
  %53 = vmatpush1.xpose.msra.mxu0 %v43
  %54 = vmatprep.subr.mxu0 0.0
  %55 = vmatpush1.xpose.msra.mxu0 %v46
  %56 = vmatprep.subr.mxu0 0.0
  %57 = vmatpush1.xpose.msra.mxu0 0.0
  %58 = vmatprep.subr.mxu0 0.0
  %59 = vmatpush1.xpose.msra.mxu0 0.0
  %60 = vmatprep.subr.mxu0 0.0
  %61 = vmatpush1.xpose.msra.mxu0 0.0
  %62 = vmatprep.subr.mxu0 0.0
  %63 = vmatpush1.xpose.msra.mxu0 0.0
  %64 = vmatprep.subr.mxu0 0.0
  %65 = vmatpush1.xpose.msra.mxu0 0.0
  %66 = vmatprep.subr.mxu0 0.0
  %67 = vmatpush1.xpose.msra.mxu0 0.0
  %68 = vmatprep.subr.mxu0 0.0
  %69 = vmatpush1.xpose.msra.mxu0 0.0
  %70 = vmatprep.subr.mxu0 0.0
  %71 = vmatpush1.xpose.msra.mxu0 0.0
  %72 = vmatprep.subr.mxu0 0.0
  %73 = vmatpush1.xpose.msra.mxu0 0.0
  %74 = vmatprep.subr.mxu0 0.0
  %75 = vmatpush1.xpose.msra.mxu0 0.0
  %76 = vmatprep.subr.mxu0 0.0
  %77 = vmatpush1.xpose.msra.mxu0 0.0
  %78 = vmatprep.subr.mxu0 0.0
  %79 = vmatpush1.xpose.msra.mxu0 0.0
  %80 = vmatprep.subr.mxu0 0.0
  %81 = vmatpush1.xpose.msra.mxu0 0.0
  %82 = vmatprep.subr.mxu0 0.0
  %83 = vmatpush1.xpose.msra.mxu0 0.0
  %84 = vmatprep.subr.mxu0 0.0
  %85 = vmatpush1.xpose.msra.mxu0 0.0
  %86 = vmatprep.subr.mxu0 0.0
  %87 = vmatpush1.xpose.msra.mxu0 0.0
  %88 = vmatprep.subr.mxu0 0.0
  %89 = vmatpush1.xpose.msra.mxu0 0.0
  %90 = vmatprep.subr.mxu0 0.0
  %91 = vmatpush1.xpose.msra.mxu0 0.0
  %92 = vmatprep.subr.mxu0 0.0
  %93 = vmatpush1.xpose.msra.mxu0 0.0
  %94 = vmatprep.subr.mxu0 0.0
  %95 = vmatpush1.xpose.msra.mxu0 0.0
  %96 = vmatprep.subr.mxu0 0.0
  %97 = vmatpush1.xpose.msra.mxu0 0.0
  %98 = vmatprep.subr.mxu0 0.0
  %99 = vmatpush1.xpose.msra.mxu0 0.0
  %100 = vmatprep.subr.mxu0 0.0
  %101 = vmatpush1.xpose.msra.mxu0 0.0
  %102 = vmatprep.subr.mxu0 0.0
  %103 = vmatpush1.xpose.msra.mxu0 0.0
  %104 = vmatprep.subr.mxu0 0.0
  %105 = vmatpush1.xpose.msra.mxu0 0.0
  %106 = vmatprep.subr.mxu0 0.0
  %107 = vmatpush1.xpose.msra.mxu0 0.0
  %108 = vmatprep.subr.mxu0 0.0
  %109 = vmatpush1.xpose.msra.mxu0 0.0
  %110 = vmatprep.subr.mxu0 0.0
  %111 = vmatpush1.xpose.msra.mxu0 0.0
  %112 = vmatprep.mubr.f32.mxu0 0.0
  %113 = vmatmul.mubr.f32.gmra.mrb[0].mxu0 %v34
  %v114 = vpop.f32.mrb[0].mxu0
  %v115 = vadd.f32 %v30, %v114
  %v116 = vpop.f32.mrb[0].mxu0
  %117 = vdwg.mxu0
  %v118 = vtanh.pop %v115
  %v119 = vld [vmem:[%s3] sm:$0x7]
  %v120 = vld [vmem:[%s4] sm:$0x1]
  %v122 = vlaneseq
  %v123 = vshrl.u32 %v122, 7
  %v124 = vsub.s32 0, %v123
  %v125 = vrot.slane %v120, %v124
  %vm127 = vcmask 261120
  %v129 = vsel %vm127, %v118, 0
  %v132 = vsel %vm127, %v119, 0
  %134 = vmatprep.subr.mxu0 0.0
  %135 = vmatpush1.xpose.msra.mxu0 %v132
  %136 = vmatprep.subr.mxu0 0.0
  %137 = vmatpush1.xpose.msra.mxu0 0.0
  %138 = vmatprep.subr.mxu0 0.0
  %139 = vmatpush1.xpose.msra.mxu0 0.0
  %140 = vmatprep.subr.mxu0 0.0
  %141 = vmatpush1.xpose.msra.mxu0 0.0
  %142 = vmatprep.subr.mxu0 0.0
  %143 = vmatpush1.xpose.msra.mxu0 0.0
  %144 = vmatprep.subr.mxu0 0.0
  %145 = vmatpush1.xpose.msra.mxu0 0.0
  %146 = vmatprep.subr.mxu0 0.0
  %147 = vmatpush1.xpose.msra.mxu0 0.0
  %148 = vmatprep.subr.mxu0 0.0
  %149 = vmatpush1.xpose.msra.mxu0 0.0
  %150 = vmatprep.subr.mxu0 0.0
  %151 = vmatpush1.xpose.msra.mxu0 0.0
  %152 = vmatprep.subr.mxu0 0.0
  %153 = vmatpush1.xpose.msra.mxu0 0.0
  %154 = vmatprep.subr.mxu0 0.0
  %155 = vmatpush1.xpose.msra.mxu0 0.0
  %156 = vmatprep.subr.mxu0 0.0
  %157 = vmatpush1.xpose.msra.mxu0 0.0
  %158 = vmatprep.subr.mxu0 0.0
  %159 = vmatpush1.xpose.msra.mxu0 0.0
  %160 = vmatprep.subr.mxu0 0.0
  %161 = vmatpush1.xpose.msra.mxu0 0.0
  %162 = vmatprep.subr.mxu0 0.0
  %163 = vmatpush1.xpose.msra.mxu0 0.0
  %164 = vmatprep.subr.mxu0 0.0
  %165 = vmatpush1.xpose.msra.mxu0 0.0
  %166 = vmatprep.subr.mxu0 0.0
  %167 = vmatpush1.xpose.msra.mxu0 0.0
  %168 = vmatprep.subr.mxu0 0.0
  %169 = vmatpush1.xpose.msra.mxu0 0.0
  %170 = vmatprep.subr.mxu0 0.0
  %171 = vmatpush1.xpose.msra.mxu0 0.0
  %172 = vmatprep.subr.mxu0 0.0
  %173 = vmatpush1.xpose.msra.mxu0 0.0
  %174 = vmatprep.subr.mxu0 0.0
  %175 = vmatpush1.xpose.msra.mxu0 0.0
  %176 = vmatprep.subr.mxu0 0.0
  %177 = vmatpush1.xpose.msra.mxu0 0.0
  %178 = vmatprep.subr.mxu0 0.0
  %179 = vmatpush1.xpose.msra.mxu0 0.0
  %180 = vmatprep.subr.mxu0 0.0
  %181 = vmatpush1.xpose.msra.mxu0 0.0
  %182 = vmatprep.subr.mxu0 0.0
  %183 = vmatpush1.xpose.msra.mxu0 0.0
  %184 = vmatprep.subr.mxu0 0.0
  %185 = vmatpush1.xpose.msra.mxu0 0.0
  %186 = vmatprep.subr.mxu0 0.0
  %187 = vmatpush1.xpose.msra.mxu0 0.0
  %188 = vmatprep.subr.mxu0 0.0
  %189 = vmatpush1.xpose.msra.mxu0 0.0
  %190 = vmatprep.subr.mxu0 0.0
  %191 = vmatpush1.xpose.msra.mxu0 0.0
  %192 = vmatprep.subr.mxu0 0.0
  %193 = vmatpush1.xpose.msra.mxu0 0.0
  %194 = vmatprep.subr.mxu0 0.0
  %195 = vmatpush1.xpose.msra.mxu0 0.0
  %196 = vmatprep.subr.mxu0 0.0
  %197 = vmatpush1.xpose.msra.mxu0 0.0
  %198 = vmatprep.mubr.f32.mxu0 0.0
  %199 = vmatmul.mubr.f32.gmra.mrb[0].mxu0 %v129
  %v200 = vpop.f32.mrb[0].mxu0
  %v201 = vadd.f32 %v125, %v200
  %v202 = vpop.f32.mrb[0].mxu0
  %203 = vdwg.mxu0
  %204 = vst.msk [vmem:[%s5] sm:$0xff] %vm32, %v201
  // Predicated region
  $region22: #{tpu_custom_call.1} parent=0 // pred_check
    _
  $region23: #{tpu_custom_call.1} parent=0 // pred_check_branch
    %206 = sbr.rel (0) target = $region25
  $region24: #{tpu_custom_call.1} parent=0 // pred_region
    _
  $region25: #{tpu_custom_call.1} parent=0 // pred_fallthru
    _
  // Predicated region
  $region26: #{tpu_custom_call.1} parent=0 // pred_check
    _
  $region27: #{tpu_custom_call.1} parent=0 // pred_check_branch
    %208 = sbr.rel (0) target = $region29
  $region28: #{tpu_custom_call.1} parent=0 // pred_region
    _
  $region29: #{tpu_custom_call.1} parent=0 // pred_fallthru
    _

</llo_original>
